<compile_context>
chip_gen: v7x
topology: tpu7x:2x2x1
jax: 0.10.0
libtpu: 0.0.40
codegen_flags: <defaults>
</compile_context>

<pallas_src>
import jax
import jax.numpy as jnp
from jax.experimental import pallas as pl
from jax.experimental.pallas import tpu as pltpu


def _h_swish_kernel(x_ref, o_ref):
    # h_sigmoid(x) = relu6(x + 3) / 6 ; h_swish(x) = x * h_sigmoid(x)
    x = x_ref[...].astype(jnp.float32)
    hs = jnp.clip(x + 3.0, 0.0, 6.0) * (1.0 / 6.0)
    o_ref[...] = (x * hs).astype(o_ref.dtype)


def _round_up(a, b):
    return -(-a // b) * b


def _chip_tuning():
    """Per-generation (target_tile_bytes_per_buffer, vmem_limit_cap)."""
    try:
        kind = jax.devices()[0].device_kind.lower()
    except Exception:
        kind = ""
    if "v5" in kind:            # v5e: 16 MiB scoped-VMEM default; 2 MiB tiles are the sweet spot.
        return 2 * 1024 * 1024, 16 * 1024 * 1024
    if "v7" in kind or "7x" in kind:  # v7x: 3.2 TB/s HBM, 64 MiB/TC VMEM -> bigger tiles.
        return 8 * 1024 * 1024, 48 * 1024 * 1024
    if "v6" in kind:            # v6e: 4 MiB tiles keep the ~0.35 us/step overhead <~10%.
        return 4 * 1024 * 1024, 32 * 1024 * 1024
    return 4 * 1024 * 1024, 32 * 1024 * 1024


def h_swish(x):
    """Applies h_swish elementwise. Accepts any shape; NCHW expected from PyTorch."""
    orig_shape = x.shape
    dtype = x.dtype
    n_elem = x.size
    itemsize = jnp.dtype(dtype).itemsize

    # Sublane granularity: 8 (32-bit) / 16 (16-bit) / 32 (8-bit dtypes).
    sub = max(8, 32 // itemsize)

    # Adaptive lane width: largest of {1024,512,256,128} dividing n_elem, so
    # the common NCHW activation case needs no pad and no output slice.
    lanes = 128
    for cand in (1024, 512, 256):
        if n_elem % cand == 0:
            lanes = cand
            break

    rows = -(-n_elem // lanes)            # ceil
    padded_len = rows * lanes
    needs_pad = padded_len != n_elem      # rare: pad < lanes elements

    target_tile_bytes, vmem_cap = _chip_tuning()

    # Tile rows: multi-MiB, sublane-aligned, never degenerate, and capped so
    # the grid has ~4 steps (DMA/compute overlap + megacore split).
    tile_r = max(sub, (target_tile_bytes // (lanes * itemsize)) // sub * sub)
    tile_r = min(tile_r, max(sub, _round_up(-(-rows // 4), sub)))

    grid_steps = pl.cdiv(rows, tile_r)    # partial last block: writes masked,
                                          # OOB reads discarded (elementwise).

    x_flat = x.reshape(-1)
    if needs_pad:
        # h_swish(0) == 0, so zero padding is numerically safe; the tiny
        # (< lanes elements) tail is sliced off below.
        x_flat = jnp.pad(x_flat, (0, padded_len - n_elem))
    x2d = x_flat.reshape(rows, lanes)

    # Double-buffered (input + output tiles) + headroom, per-chip cap.
    tile_bytes = tile_r * lanes * itemsize
    vmem_limit = min(vmem_cap,
                     max(16 * 1024 * 1024, 4 * tile_bytes + 4 * 1024 * 1024))

    out2d = pl.pallas_call(
        _h_swish_kernel,
        out_shape=jax.ShapeDtypeStruct((rows, lanes), dtype),
        grid=(grid_steps,),
        in_specs=[pl.BlockSpec((tile_r, lanes), lambda i: (i, 0))],
        out_specs=pl.BlockSpec((tile_r, lanes), lambda i: (i, 0)),
        compiler_params=pltpu.CompilerParams(
            dimension_semantics=("parallel",),
            vmem_limit_bytes=vmem_limit,
        ),
    )(x2d)

    if needs_pad:
        return out2d.reshape(-1)[:n_elem].reshape(orig_shape)
    return out2d.reshape(orig_shape)


def _ref_h_swish(x):
    return x * (jnp.clip(x + 3.0, 0.0, 6.0) * (1.0 / 6.0))


if __name__ == "__main__":
    key = jax.random.PRNGKey(0)
    k0, k1, k2, k3, k4 = jax.random.split(key, 5)

    # Main check: NCHW f32, batch=2, channels=4, spatial=16x16 (exact-fit path).
    x = jax.random.normal(k0, (2, 4, 16, 16), dtype=jnp.float32) * 4.0
    y = jax.block_until_ready(h_swish(x))
    assert y.shape == x.shape and y.dtype == x.dtype
    assert jnp.allclose(y, _ref_h_swish(x), atol=1e-6, rtol=1e-6)

    # Another exact-fit shape.
    x2 = jax.random.normal(k1, (2, 4, 16, 32), dtype=jnp.float32) * 4.0
    y2 = jax.block_until_ready(h_swish(x2))
    assert jnp.allclose(y2, _ref_h_swish(x2), atol=1e-6, rtol=1e-6)

    # bf16 check: exercises the 16-sublane rounding path.
    x3 = (jax.random.normal(k2, (2, 8, 16, 16), dtype=jnp.float32) * 4.0).astype(jnp.bfloat16)
    y3 = jax.block_until_ready(h_swish(x3))
    assert y3.dtype == jnp.bfloat16
    assert jnp.allclose(y3.astype(jnp.float32),
                        _ref_h_swish(x3).astype(jnp.float32),
                        atol=2e-2, rtol=2e-2)

    # Pad-fallback check: element count not a multiple of 128.
    x4 = jax.random.normal(k3, (3, 5, 7, 11), dtype=jnp.float32) * 4.0
    y4 = jax.block_until_ready(h_swish(x4))
    assert y4.shape == x4.shape
    assert jnp.allclose(y4, _ref_h_swish(x4), atol=1e-6, rtol=1e-6)

    # Masked partial-last-block check: rows not a multiple of tile_r.
    x5 = jax.random.normal(k4, (3, 16, 40, 40), dtype=jnp.float32) * 4.0
    y5 = jax.block_until_ready(h_swish(x5))
    assert jnp.allclose(y5, _ref_h_swish(x5), atol=1e-6, rtol=1e-6)

    print("KERNEL_OK")
</pallas_src>

<mosaic_0001>
module attributes {stable_mosaic.version = 11 : i64} {
  func.func @_h_swish_kernel(%arg0: i32, %arg1: memref<8x1024xf32, #tpu.memory_space<vmem>>, %arg2: memref<8x1024xf32, #tpu.memory_space<vmem>>) attributes {dimension_semantics = [#tpu.dimension_semantics<parallel>], iteration_bounds = array<i64: 1>, scalar_prefetch = 0 : i64, scratch_operands = 0 : i64, tpu.core_type = #tpu.core_type<tc>, window_params = [{transform_indices = @transform_0, window_bounds = array<i64: 8, 1024>}, {transform_indices = @transform_1, window_bounds = array<i64: 8, 1024>}]} {
    %c0 = arith.constant 0 : index
    %c0_0 = arith.constant 0 : index
    %0 = vector.load %arg1[%c0, %c0_0] : memref<8x1024xf32, #tpu.memory_space<vmem>>, vector<8x1024xf32>
    %cst = arith.constant 3.000000e+00 : f32
    %1 = vector.broadcast %cst : f32 to vector<8x1024xf32>
    %2 = arith.addf %0, %1 : vector<8x1024xf32>
    %cst_1 = arith.constant 0.000000e+00 : f32
    %cst_2 = arith.constant 6.000000e+00 : f32
    %3 = vector.broadcast %cst_1 : f32 to vector<8x1024xf32>
    %4 = arith.maximumf %3, %2 : vector<8x1024xf32>
    %5 = vector.broadcast %cst_2 : f32 to vector<8x1024xf32>
    %6 = arith.minimumf %5, %4 : vector<8x1024xf32>
    %cst_3 = arith.constant 0.166666672 : f32
    %7 = vector.broadcast %cst_3 : f32 to vector<8x1024xf32>
    %8 = arith.mulf %6, %7 : vector<8x1024xf32>
    %9 = arith.mulf %0, %8 : vector<8x1024xf32>
    %c0_4 = arith.constant 0 : index
    %c0_5 = arith.constant 0 : index
    %10 = vector.load %arg2[%c0_4, %c0_5] : memref<8x1024xf32, #tpu.memory_space<vmem>>, vector<8x1024xf32>
    tpu.vector_store %arg2[%c0_4, %c0_5], %9 {strides = array<i32>} : memref<8x1024xf32, #tpu.memory_space<vmem>>, vector<8x1024xf32>,
    return
  }
  func.func @transform_0(%arg0: i32) -> (i32, i32) {
    %c0_i32 = arith.constant 0 : i32
    %c0_i32_0 = arith.constant 0 : i32
    return %arg0, %c0_i32 : i32, i32
  }
  func.func @transform_1(%arg0: i32) -> (i32, i32) {
    %c0_i32 = arith.constant 0 : i32
    %c0_i32_0 = arith.constant 0 : i32
    return %arg0, %c0_i32 : i32, i32
  }
}

</mosaic_0001>

<llo_original>
// kernel: tpu_custom_call.1
$region0: #{tpu_custom_call.1}
  #allocation0 [shape = 'u32[]', space=smem, size = 0x4, offset = 0x4, fixed_abs, tag = 'smem constant byte address 0x4 - core index']
  #allocation1 [shape = 'u32[144,128]{1,0:T(1,128)}', space=vmem, size = 0x12000, scoped, tag = 'internal scratch']
  %s0 = inlined_call_operand.hbm [shape: f32[2,1024], index: 0, kind: input, shape index: {}]
  %s1 = inlined_call_operand.hbm [shape: f32[2,1024], index: 1, kind: output, shape index: {}]
  %s2 = sld [smem:[#allocation0]]
  $region18: #{tpu_custom_call.1} parent=0
    _
  %s4 = ssub.s32 1, %s2
  %s5 = scalar_select 0, %s4, %s2
  $region1: #{tpu_custom_call.1} parent=0
    #allocation2 [shape = 'u8[32768]{0}', space=vmem, size = 0x8000, scoped, tag = 'input window, operand 0, single buffered']
    #allocation3 [shape = 's32[1]{0}', space=sflag, size = 0x4, scoped, tag = 'scoped memory for tpu_custom_call.1']
    #allocation4 [shape = 's32[1]{0}', space=sflag, size = 0x4, scoped, tag = 'scoped memory for tpu_custom_call.1']
    #allocation5 [shape = 'u8[32768]{0}', space=vmem, size = 0x8000, scoped, tag = 'output window, operand 0, single buffered']
    %6 = vsyncpa [#allocation3], 0
    %7 = vsyncpa [#allocation4], 0
    // Predicated region
    $region2: #{tpu_custom_call.1} parent=1 // pred_check
      _
    $region3: #{tpu_custom_call.1} parent=1 // pred_check_branch
      %9 = sbr.rel (0) target = $region5
    $region4: #{tpu_custom_call.1} parent=1 // pred_region
      %s11 = ssub.s32 1024, 256
      %12 = vsyncadd [#allocation3], %s11
      %s13 = sshll.u32 [#allocation2], 4
      %s14 = int_to_ptr.vmem [resolvable:$true] %s13
      %19 = dma.hbm_to_vmem [thread:$0]  %s0, 256, %s14, [#allocation3], 256, 256, 16
    $region5: #{tpu_custom_call.1} parent=1 // pred_fallthru
      _
    // Predicated region
    $region6: #{tpu_custom_call.1} parent=1 // pred_check
      _
    $region7: #{tpu_custom_call.1} parent=1 // pred_check_branch
      %21 = sbr.rel (0) target = $region9
    $region8: #{tpu_custom_call.1} parent=1 // pred_region
      %22 = dma.done [#allocation3], 1024
    $region9: #{tpu_custom_call.1} parent=1 // pred_fallthru
      _
    %v23 = vld [vmem:[#allocation2] sm:$0xff]
    %v24 = vld [vmem:[#allocation2 + $0x8] sm:$0xff]
    %v25 = vld [vmem:[#allocation2 + $0x10] sm:$0xff]
    %v26 = vld [vmem:[#allocation2 + $0x18] sm:$0xff]
    %v27 = vld [vmem:[#allocation2 + $0x20] sm:$0xff]
    %v28 = vld [vmem:[#allocation2 + $0x28] sm:$0xff]
    %v29 = vld [vmem:[#allocation2 + $0x30] sm:$0xff]
    %v30 = vld [vmem:[#allocation2 + $0x38] sm:$0xff]
    %v31 = vadd.f32 %v23, 3.0
    %v32 = vadd.f32 %v24, 3.0
    %v33 = vadd.f32 %v25, 3.0
    %v34 = vadd.f32 %v26, 3.0
    %v35 = vadd.f32 %v27, 3.0
    %v36 = vadd.f32 %v28, 3.0
    %v37 = vadd.f32 %v29, 3.0
    %v38 = vadd.f32 %v30, 3.0
    %v39 = vmax.f32 %v31, 0.0
    %v40 = vmax.f32 %v32, 0.0
    %v41 = vmax.f32 %v33, 0.0
    %v42 = vmax.f32 %v34, 0.0
    %v43 = vmax.f32 %v35, 0.0
    %v44 = vmax.f32 %v36, 0.0
    %v45 = vmax.f32 %v37, 0.0
    %v46 = vmax.f32 %v38, 0.0
    %v47 = vmin.f32 %v39, 6.0
    %v48 = vmin.f32 %v40, 6.0
    %v49 = vmin.f32 %v41, 6.0
    %v50 = vmin.f32 %v42, 6.0
    %v51 = vmin.f32 %v43, 6.0
    %v52 = vmin.f32 %v44, 6.0
    %v53 = vmin.f32 %v45, 6.0
    %v54 = vmin.f32 %v46, 6.0
    %v55 = vmul.f32 %v47, 0.16666667
    %v56 = vmul.f32 %v48, 0.16666667
    %v57 = vmul.f32 %v49, 0.16666667
    %v58 = vmul.f32 %v50, 0.16666667
    %v59 = vmul.f32 %v51, 0.16666667
    %v60 = vmul.f32 %v52, 0.16666667
    %v61 = vmul.f32 %v53, 0.16666667
    %v62 = vmul.f32 %v54, 0.16666667
    %v63 = vmul.f32 %v23, %v55
    %v64 = vmul.f32 %v24, %v56
    %v65 = vmul.f32 %v25, %v57
    %v66 = vmul.f32 %v26, %v58
    %v67 = vmul.f32 %v27, %v59
    %v68 = vmul.f32 %v28, %v60
    %v69 = vmul.f32 %v29, %v61
    %v70 = vmul.f32 %v30, %v62
    %71 = vst [vmem:[#allocation5] sm:$0xff] %v63
    %72 = vst [vmem:[#allocation5 + $0x8] sm:$0xff] %v64
    %73 = vst [vmem:[#allocation5 + $0x10] sm:$0xff] %v65
    %74 = vst [vmem:[#allocation5 + $0x18] sm:$0xff] %v66
    %75 = vst [vmem:[#allocation5 + $0x20] sm:$0xff] %v67
    %76 = vst [vmem:[#allocation5 + $0x28] sm:$0xff] %v68
    %77 = vst [vmem:[#allocation5 + $0x30] sm:$0xff] %v69
    %78 = vst [vmem:[#allocation5 + $0x38] sm:$0xff] %v70
    // Predicated region
    $region10: #{tpu_custom_call.1} parent=1 // pred_check
      _
    $region11: #{tpu_custom_call.1} parent=1 // pred_check_branch
      %80 = sbr.rel (0) target = $region13
    $region12: #{tpu_custom_call.1} parent=1 // pred_region
      %s82 = ssub.s32 1024, 256
      %83 = vsyncadd [#allocation4], %s82
      %s84 = sshll.u32 [#allocation5], 4
      %s85 = int_to_ptr.vmem [resolvable:$true] %s84
      %90 = dma.vmem_to_hbm [thread:$0]  %s85, 256, %s1, [#allocation4], 256, 256, 16
    $region13: #{tpu_custom_call.1} parent=1 // pred_fallthru
      _
    // Predicated region
    $region14: #{tpu_custom_call.1} parent=1 // pred_check
      _
    $region15: #{tpu_custom_call.1} parent=1 // pred_check_branch
      %92 = sbr.rel (0) target = $region17
    $region16: #{tpu_custom_call.1} parent=1 // pred_region
      %93 = dma.done [#allocation4], 1024
    $region17: #{tpu_custom_call.1} parent=1 // pred_fallthru
      _
    %94 = vsyncpa [#allocation3], 1
    %95 = vsyncpa [#allocation4], 1

</llo_original>
